<compile_context>
chip_gen: v5e
topology: v5e:2x2
jax: 0.10.0
libtpu: 0.0.40
codegen_flags: <defaults>
</compile_context>

<pallas_src>
import jax
import jax.numpy as jnp
import numpy as np
from jax.experimental import pallas as pl
from jax.experimental.pallas import tpu as pltpu

EPS = 1e-5


def _double_conv_kernel(x_ref, w1_ref, b1_ref, g1_ref, be1_ref,
                        w2_ref, b2_ref, g2_ref, be2_ref,
                        sel_ref, selt_ref, o_ref):
    N, H, _ = x_ref.shape
    NH = N * H
    L = o_ref.shape[-1]            # W * Cout (lane-dense, 128 at the test shape)
    C = sel_ref.shape[-1]          # Cout
    W = L // C
    inv_count = 1.0 / float(N * H * W)

    def im2col_rows(src):
        # src: (N, H, WC) bf16.  Returns the fused im2col lhs (N*H, 3*WC): for each output
        # row h the three vertical taps [x[h-1] | x[h] | x[h+1]] lane-concatenated.  The
        # zero rows at the top/bottom image border realize the conv's row padding here,
        # so no wrapper-side pad and no separate padded scratch buffer is needed.
        wc = src.shape[-1]
        zrow = jnp.zeros((N, 1, wc), jnp.bfloat16)
        up = jnp.concatenate([zrow, src[:, :H - 1, :]], axis=1)     # x[h-1]
        down = jnp.concatenate([src[:, 1:, :], zrow], axis=1)       # x[h+1]
        return jnp.concatenate([up, src, down], axis=-1).reshape(NH, 3 * wc)

    def conv3x3(src, wmat_ref, bias_lane):
        # One wide MXU matmul per conv: (NH, 3*WC) x (3*WC, L), f32 accumulation.
        # Horizontal taps + left/right zero padding live in the block-Toeplitz weights.
        return jnp.dot(im2col_rows(src), wmat_ref[...],
                       preferred_element_type=jnp.float32) + bias_lane

    def bn_relu(y, gamma, beta):
        # Train-mode batch-norm folded into a per-channel scale/shift, applied in the
        # lane-merged (NH, W*C) layout.  All statistics stay in f32 (v5e-safe).
        stats_lane = jnp.concatenate(
            [jnp.sum(y, axis=0, keepdims=True),
             jnp.sum(y * y, axis=0, keepdims=True)], axis=0)            # (2, L)
        stats_ch = jnp.dot(stats_lane, sel_ref[...],
                           preferred_element_type=jnp.float32)          # (2, C)
        mean = stats_ch[0:1] * inv_count                                 # (1, C)
        # TODO(synk): switch to a shifted/Welford combine for the production two-pass BN.
        var = jnp.maximum(stats_ch[1:2] * inv_count - mean * mean, 0.0)
        scale = gamma * jax.lax.rsqrt(var + EPS)                         # (1, C)
        shift = beta - mean * scale
        ss_lane = jnp.dot(jnp.concatenate([scale, shift], axis=0), selt_ref[...],
                          preferred_element_type=jnp.float32)            # (2, L)
        return jnp.maximum(y * ss_lane[0:1] + ss_lane[1:2], 0.0)         # (NH, L) f32

    # --- conv1 -> BN1 -> ReLU ---
    a1 = bn_relu(conv3x3(x_ref[...], w1_ref, b1_ref[...]),
                 g1_ref[...], be1_ref[...])

    # --- conv2 -> BN2 -> ReLU; output store is a full lane-dense (NH, L) slab ---
    y2 = conv3x3(a1.reshape(N, H, L).astype(jnp.bfloat16), w2_ref, b2_ref[...])
    o_ref[...] = bn_relu(y2, g2_ref[...], be2_ref[...]).astype(o_ref.dtype)


def conv_weight_to_toeplitz(w, width):
    """(3, 3, Cin, Cout) -> (3, width*Cin, width*Cout) block-Toeplitz matrices.

    t[dy, wi*Cin + ci, wo*Cout + co] = w[dy, wi - wo + 1, ci, co] when the tap is in
    range, else 0 (which also realizes the left/right zero padding of the conv).
    NOTE: only fold W into K while 3*width*Cin stays small (early UNet layers).
    """
    kh, kw, cin, cout = w.shape
    wi = jnp.arange(width)[:, None]
    wo = jnp.arange(width)[None, :]
    dx = wi - wo + 1
    valid = ((dx >= 0) & (dx < kw)).astype(w.dtype)
    dxc = jnp.clip(dx, 0, kw - 1)
    g = w[:, dxc, :, :]                          # (kh, wi, wo, ci, co)
    g = g * valid[None, :, :, None, None]
    g = jnp.transpose(g, (0, 1, 3, 2, 4))        # (kh, wi, ci, wo, co)
    return g.reshape(kh, width * cin, width * cout)


def double_conv(x_nchw, params, out_dtype=jnp.float32):
    """Forward pass. x_nchw: (N, Cin, H, W) f32. Returns (N, Cout, H, W) out_dtype."""
    N, Cin, H, W = x_nchw.shape
    Cout = params["w2"].shape[-1]
    L = W * Cout

    # NCHW -> NHWC -> lane-merged (N, H, W*Cin), bf16 MXU operand.  No wrapper-side row
    # padding: the halo is realized in-kernel, so the input is read from HBM only once.
    x_m = jnp.transpose(x_nchw, (0, 2, 3, 1)).reshape(N, H, W * Cin).astype(jnp.bfloat16)

    # Block-Toeplitz weights reshaped to the fused im2col layout (dy-major rows).
    w1t = conv_weight_to_toeplitz(params["w1"], W).reshape(3 * W * Cin, L).astype(jnp.bfloat16)
    w2t = conv_weight_to_toeplitz(params["w2"], W).reshape(3 * W * Cout, L).astype(jnp.bfloat16)
    b1l = jnp.tile(params["b1"].reshape(1, Cout), (1, W)).astype(jnp.float32)
    b2l = jnp.tile(params["b2"].reshape(1, Cout), (1, W)).astype(jnp.float32)
    g1 = params["g1"].reshape(1, Cout).astype(jnp.float32)
    be1 = params["be1"].reshape(1, Cout).astype(jnp.float32)
    g2 = params["g2"].reshape(1, Cout).astype(jnp.float32)
    be2 = params["be2"].reshape(1, Cout).astype(jnp.float32)
    # Channel selection matrix: sel[w*Cout + c, c'] = 1 iff c == c'.
    sel = jnp.tile(jnp.eye(Cout, dtype=jnp.float32), (W, 1))    # (W*Cout, Cout)
    selt = jnp.transpose(sel)                                    # (Cout, W*Cout)

    vmem = pl.BlockSpec(memory_space=pltpu.MemorySpace.VMEM)
    out_flat = pl.pallas_call(
        _double_conv_kernel,
        out_shape=jax.ShapeDtypeStruct((N * H, L), out_dtype),
        in_specs=[vmem] * 11,
        out_specs=vmem,
        # VMEM budget is tiny at this shape; re-derive per chip once the production
        # grid lands (keep well under 64 MiB on v7x, can go toward ~100 MiB on v5e/v6e).
        compiler_params=pltpu.CompilerParams(vmem_limit_bytes=32 * 1024 * 1024),
    )(x_m, w1t, b1l, g1, be1, w2t, b2l, g2, be2, sel, selt)

    # lane-merged (N*H, W*Cout) -> NHWC -> NCHW (PyTorch-compatible boundary).
    return jnp.transpose(out_flat.reshape(N, H, W, Cout), (0, 3, 1, 2))


def init_params(key, in_channels, out_channels):
    ks = jax.random.split(key, 8)
    k1 = 1.0 / np.sqrt(in_channels * 9)
    k2 = 1.0 / np.sqrt(out_channels * 9)
    return {
        "w1": k1 * jax.random.normal(ks[0], (3, 3, in_channels, out_channels), jnp.float32),
        "b1": k1 * jax.random.normal(ks[1], (out_channels,), jnp.float32),
        "g1": 1.0 + 0.1 * jax.random.normal(ks[2], (out_channels,), jnp.float32),
        "be1": 0.1 * jax.random.normal(ks[3], (out_channels,), jnp.float32),
        "w2": k2 * jax.random.normal(ks[4], (3, 3, out_channels, out_channels), jnp.float32),
        "b2": k2 * jax.random.normal(ks[5], (out_channels,), jnp.float32),
        "g2": 1.0 + 0.1 * jax.random.normal(ks[6], (out_channels,), jnp.float32),
        "be2": 0.1 * jax.random.normal(ks[7], (out_channels,), jnp.float32),
    }


def ref_forward(x_nchw, p):
    """Pure-JAX reference (lax.conv, bf16 conv operands like the kernel, f32 BN)."""
    x = jnp.transpose(x_nchw, (0, 2, 3, 1)).astype(jnp.float32)

    def conv(t, w, b):
        y = jax.lax.conv_general_dilated(
            t.astype(jnp.bfloat16), w.astype(jnp.bfloat16),
            window_strides=(1, 1), padding="SAME",
            dimension_numbers=("NHWC", "HWIO", "NHWC"),
            preferred_element_type=jnp.float32)
        return y + b.reshape(1, 1, 1, -1)

    def bn_relu(t, g, b):
        m = jnp.mean(t, axis=(0, 1, 2), keepdims=True)
        v = jnp.mean((t - m) ** 2, axis=(0, 1, 2), keepdims=True)
        y = (t - m) * jax.lax.rsqrt(v + EPS) * g.reshape(1, 1, 1, -1) + b.reshape(1, 1, 1, -1)
        return jnp.maximum(y, 0.0)

    y = bn_relu(conv(x, p["w1"], p["b1"]), p["g1"], p["be1"])
    y = bn_relu(conv(y, p["w2"], p["b2"]), p["g2"], p["be2"])
    return jnp.transpose(y, (0, 3, 1, 2))


if __name__ == "__main__":
    key = jax.random.PRNGKey(0)
    k_x, k_p = jax.random.split(key)

    N, Cin, Cout, H, W = 2, 4, 8, 16, 16
    x = jax.random.normal(k_x, (N, Cin, H, W), jnp.float32)
    params = init_params(k_p, Cin, Cout)

    out = jax.block_until_ready(jax.jit(double_conv)(x, params))
    ref = jax.block_until_ready(jax.jit(ref_forward)(x, params))

    assert out.shape == (N, Cout, H, W), out.shape
    # bf16 MXU operands -> compare at bf16-appropriate tolerance.
    np.testing.assert_allclose(np.asarray(out), np.asarray(ref), rtol=1e-2, atol=1e-2)

    print("KERNEL_OK")
</pallas_src>

<mosaic_0001>
module attributes {stable_mosaic.version = 11 : i64} {
  func.func @_double_conv_kernel(%arg0: memref<2x16x64xbf16, #tpu.memory_space<vmem>>, %arg1: memref<192x128xbf16, #tpu.memory_space<vmem>>, %arg2: memref<1x128xf32, #tpu.memory_space<vmem>>, %arg3: memref<1x8xf32, #tpu.memory_space<vmem>>, %arg4: memref<1x8xf32, #tpu.memory_space<vmem>>, %arg5: memref<384x128xbf16, #tpu.memory_space<vmem>>, %arg6: memref<1x128xf32, #tpu.memory_space<vmem>>, %arg7: memref<1x8xf32, #tpu.memory_space<vmem>>, %arg8: memref<1x8xf32, #tpu.memory_space<vmem>>, %arg9: memref<128x8xf32, #tpu.memory_space<vmem>>, %arg10: memref<8x128xf32, #tpu.memory_space<vmem>>, %arg11: memref<32x128xf32, #tpu.memory_space<vmem>>) attributes {dimension_semantics = [], scalar_prefetch = 0 : i64, scratch_operands = 0 : i64, tpu.core_type = #tpu.core_type<tc>} {
    %c0 = arith.constant 0 : index
    %c0_0 = arith.constant 0 : index
    %c0_1 = arith.constant 0 : index
    %0 = vector.load %arg0[%c0, %c0_0, %c0_1] : memref<2x16x64xbf16, #tpu.memory_space<vmem>>, vector<2x16x64xbf16>
    %c0_2 = arith.constant 0 : index
    %c0_3 = arith.constant 0 : index
    %1 = vector.load %arg2[%c0_2, %c0_3] : memref<1x128xf32, #tpu.memory_space<vmem>>, vector<1x128xf32>
    %cst = arith.constant 0.000000e+00 : bf16
    %2 = vector.broadcast %cst : bf16 to vector<2x1x64xbf16>
    %3 = vector.extract_strided_slice %0 {offsets = [0, 0, 0], sizes = [2, 15, 64], strides = [1, 1, 1]} : vector<2x16x64xbf16> to vector<2x15x64xbf16>
    %4 = tpu.concatenate %2, %3 in 1 : vector<2x1x64xbf16>, vector<2x15x64xbf16> -> vector<2x16x64xbf16>
    %5 = vector.extract_strided_slice %0 {offsets = [0, 1, 0], sizes = [2, 15, 64], strides = [1, 1, 1]} : vector<2x16x64xbf16> to vector<2x15x64xbf16>
    %6 = tpu.concatenate %5, %2 in 1 : vector<2x15x64xbf16>, vector<2x1x64xbf16> -> vector<2x16x64xbf16>
    %7 = tpu.concatenate %4, %0, %6 in 2 : vector<2x16x64xbf16>, vector<2x16x64xbf16>, vector<2x16x64xbf16> -> vector<2x16x192xbf16>
    %8 = vector.shape_cast %7 : vector<2x16x192xbf16> to vector<32x192xbf16>
    %c0_4 = arith.constant 0 : index
    %c0_5 = arith.constant 0 : index
    %9 = vector.load %arg1[%c0_4, %c0_5] : memref<192x128xbf16, #tpu.memory_space<vmem>>, vector<192x128xbf16>
    %cst_6 = arith.constant dense<0.000000e+00> : vector<32x128xf32>
    %10 = tpu.matmul %8, %9, %cst_6 {dimension_numbers = #tpu.dot_dimension_numbers<[1], [0], [0], [1], [0, 0, 1, 1], [], []>} : vector<32x192xbf16>, vector<192x128xbf16>, vector<32x128xf32> -> vector<32x128xf32>
    %11 = vector.broadcast %1 : vector<1x128xf32> to vector<32x128xf32>
    %12 = arith.addf %10, %11 : vector<32x128xf32>
    %c0_7 = arith.constant 0 : index
    %c0_8 = arith.constant 0 : index
    %13 = vector.load %arg3[%c0_7, %c0_8] : memref<1x8xf32, #tpu.memory_space<vmem>>, vector<1x8xf32>
    %c0_9 = arith.constant 0 : index
    %c0_10 = arith.constant 0 : index
    %14 = vector.load %arg4[%c0_9, %c0_10] : memref<1x8xf32, #tpu.memory_space<vmem>>, vector<1x8xf32>
    %cst_11 = arith.constant dense<0.000000e+00> : vector<128xf32>
    %15 = vector.multi_reduction <add>, %12, %cst_11 [0] : vector<32x128xf32> to vector<128xf32>
    %16 = vector.shape_cast %15 : vector<128xf32> to vector<1x128xf32>
    %17 = arith.mulf %12, %12 : vector<32x128xf32>
    %cst_12 = arith.constant dense<0.000000e+00> : vector<128xf32>
    %18 = vector.multi_reduction <add>, %17, %cst_12 [0] : vector<32x128xf32> to vector<128xf32>
    %19 = vector.shape_cast %18 : vector<128xf32> to vector<1x128xf32>
    %20 = tpu.concatenate %16, %19 in 0 : vector<1x128xf32>, vector<1x128xf32> -> vector<2x128xf32>
    %c0_13 = arith.constant 0 : index
    %c0_14 = arith.constant 0 : index
    %21 = vector.load %arg9[%c0_13, %c0_14] : memref<128x8xf32, #tpu.memory_space<vmem>>, vector<128x8xf32>
    %cst_15 = arith.constant dense<0.000000e+00> : vector<2x8xf32>
    %22 = tpu.matmul %20, %21, %cst_15 {dimension_numbers = #tpu.dot_dimension_numbers<[1], [0], [0], [1], [0, 0, 1, 1], [], []>} : vector<2x128xf32>, vector<128x8xf32>, vector<2x8xf32> -> vector<2x8xf32>
    %23 = vector.extract_strided_slice %22 {offsets = [0, 0], sizes = [1, 8], strides = [1, 1]} : vector<2x8xf32> to vector<1x8xf32>
    %cst_16 = arith.constant 0.001953125 : f32
    %24 = vector.broadcast %cst_16 : f32 to vector<1x8xf32>
    %25 = arith.mulf %23, %24 : vector<1x8xf32>
    %26 = vector.extract_strided_slice %22 {offsets = [1, 0], sizes = [1, 8], strides = [1, 1]} : vector<2x8xf32> to vector<1x8xf32>
    %cst_17 = arith.constant 0.001953125 : f32
    %27 = vector.broadcast %cst_17 : f32 to vector<1x8xf32>
    %28 = arith.mulf %26, %27 : vector<1x8xf32>
    %29 = arith.mulf %25, %25 : vector<1x8xf32>
    %30 = arith.subf %28, %29 : vector<1x8xf32>
    %cst_18 = arith.constant 0.000000e+00 : f32
    %31 = vector.broadcast %cst_18 : f32 to vector<1x8xf32>
    %32 = arith.maximumf %30, %31 : vector<1x8xf32>
    %cst_19 = arith.constant 9.99999974E-6 : f32
    %33 = vector.broadcast %cst_19 : f32 to vector<1x8xf32>
    %34 = arith.addf %32, %33 : vector<1x8xf32>
    %35 = math.rsqrt %34 : vector<1x8xf32>
    %36 = arith.mulf %13, %35 : vector<1x8xf32>
    %37 = arith.mulf %25, %36 : vector<1x8xf32>
    %38 = arith.subf %14, %37 : vector<1x8xf32>
    %39 = tpu.concatenate %36, %38 in 0 : vector<1x8xf32>, vector<1x8xf32> -> vector<2x8xf32>
    %c0_20 = arith.constant 0 : index
    %c0_21 = arith.constant 0 : index
    %40 = vector.load %arg10[%c0_20, %c0_21] : memref<8x128xf32, #tpu.memory_space<vmem>>, vector<8x128xf32>
    %cst_22 = arith.constant dense<0.000000e+00> : vector<2x128xf32>
    %41 = tpu.matmul %39, %40, %cst_22 {dimension_numbers = #tpu.dot_dimension_numbers<[1], [0], [0], [1], [0, 0, 1, 1], [], []>} : vector<2x8xf32>, vector<8x128xf32>, vector<2x128xf32> -> vector<2x128xf32>
    %42 = vector.extract_strided_slice %41 {offsets = [0, 0], sizes = [1, 128], strides = [1, 1]} : vector<2x128xf32> to vector<1x128xf32>
    %43 = vector.broadcast %42 : vector<1x128xf32> to vector<32x128xf32>
    %44 = arith.mulf %12, %43 : vector<32x128xf32>
    %45 = vector.extract_strided_slice %41 {offsets = [1, 0], sizes = [1, 128], strides = [1, 1]} : vector<2x128xf32> to vector<1x128xf32>
    %46 = vector.broadcast %45 : vector<1x128xf32> to vector<32x128xf32>
    %47 = arith.addf %44, %46 : vector<32x128xf32>
    %cst_23 = arith.constant 0.000000e+00 : f32
    %48 = vector.broadcast %cst_23 : f32 to vector<32x128xf32>
    %49 = arith.maximumf %47, %48 : vector<32x128xf32>
    %50 = vector.shape_cast %49 : vector<32x128xf32> to vector<2x16x128xf32>
    %51 = arith.truncf %50 : vector<2x16x128xf32> to vector<2x16x128xbf16>
    %c0_24 = arith.constant 0 : index
    %c0_25 = arith.constant 0 : index
    %52 = vector.load %arg6[%c0_24, %c0_25] : memref<1x128xf32, #tpu.memory_space<vmem>>, vector<1x128xf32>
    %cst_26 = arith.constant 0.000000e+00 : bf16
    %53 = vector.broadcast %cst_26 : bf16 to vector<2x1x128xbf16>
    %54 = vector.extract_strided_slice %51 {offsets = [0, 0, 0], sizes = [2, 15, 128], strides = [1, 1, 1]} : vector<2x16x128xbf16> to vector<2x15x128xbf16>
    %55 = tpu.concatenate %53, %54 in 1 : vector<2x1x128xbf16>, vector<2x15x128xbf16> -> vector<2x16x128xbf16>
    %56 = vector.extract_strided_slice %51 {offsets = [0, 1, 0], sizes = [2, 15, 128], strides = [1, 1, 1]} : vector<2x16x128xbf16> to vector<2x15x128xbf16>
    %57 = tpu.concatenate %56, %53 in 1 : vector<2x15x128xbf16>, vector<2x1x128xbf16> -> vector<2x16x128xbf16>
    %58 = tpu.concatenate %55, %51, %57 in 2 : vector<2x16x128xbf16>, vector<2x16x128xbf16>, vector<2x16x128xbf16> -> vector<2x16x384xbf16>
    %59 = vector.shape_cast %58 : vector<2x16x384xbf16> to vector<32x384xbf16>
    %c0_27 = arith.constant 0 : index
    %c0_28 = arith.constant 0 : index
    %60 = vector.load %arg5[%c0_27, %c0_28] : memref<384x128xbf16, #tpu.memory_space<vmem>>, vector<384x128xbf16>
    %cst_29 = arith.constant dense<0.000000e+00> : vector<32x128xf32>
    %61 = tpu.matmul %59, %60, %cst_29 {dimension_numbers = #tpu.dot_dimension_numbers<[1], [0], [0], [1], [0, 0, 1, 1], [], []>} : vector<32x384xbf16>, vector<384x128xbf16>, vector<32x128xf32> -> vector<32x128xf32>
    %62 = vector.broadcast %52 : vector<1x128xf32> to vector<32x128xf32>
    %63 = arith.addf %61, %62 : vector<32x128xf32>
    %c0_30 = arith.constant 0 : index
    %c0_31 = arith.constant 0 : index
    %64 = vector.load %arg7[%c0_30, %c0_31] : memref<1x8xf32, #tpu.memory_space<vmem>>, vector<1x8xf32>
    %c0_32 = arith.constant 0 : index
    %c0_33 = arith.constant 0 : index
    %65 = vector.load %arg8[%c0_32, %c0_33] : memref<1x8xf32, #tpu.memory_space<vmem>>, vector<1x8xf32>
    %cst_34 = arith.constant dense<0.000000e+00> : vector<128xf32>
    %66 = vector.multi_reduction <add>, %63, %cst_34 [0] : vector<32x128xf32> to vector<128xf32>
    %67 = vector.shape_cast %66 : vector<128xf32> to vector<1x128xf32>
    %68 = arith.mulf %63, %63 : vector<32x128xf32>
    %cst_35 = arith.constant dense<0.000000e+00> : vector<128xf32>
    %69 = vector.multi_reduction <add>, %68, %cst_35 [0] : vector<32x128xf32> to vector<128xf32>
    %70 = vector.shape_cast %69 : vector<128xf32> to vector<1x128xf32>
    %71 = tpu.concatenate %67, %70 in 0 : vector<1x128xf32>, vector<1x128xf32> -> vector<2x128xf32>
    %c0_36 = arith.constant 0 : index
    %c0_37 = arith.constant 0 : index
    %72 = vector.load %arg9[%c0_36, %c0_37] : memref<128x8xf32, #tpu.memory_space<vmem>>, vector<128x8xf32>
    %cst_38 = arith.constant dense<0.000000e+00> : vector<2x8xf32>
    %73 = tpu.matmul %71, %72, %cst_38 {dimension_numbers = #tpu.dot_dimension_numbers<[1], [0], [0], [1], [0, 0, 1, 1], [], []>} : vector<2x128xf32>, vector<128x8xf32>, vector<2x8xf32> -> vector<2x8xf32>
    %74 = vector.extract_strided_slice %73 {offsets = [0, 0], sizes = [1, 8], strides = [1, 1]} : vector<2x8xf32> to vector<1x8xf32>
    %cst_39 = arith.constant 0.001953125 : f32
    %75 = vector.broadcast %cst_39 : f32 to vector<1x8xf32>
    %76 = arith.mulf %74, %75 : vector<1x8xf32>
    %77 = vector.extract_strided_slice %73 {offsets = [1, 0], sizes = [1, 8], strides = [1, 1]} : vector<2x8xf32> to vector<1x8xf32>
    %cst_40 = arith.constant 0.001953125 : f32
    %78 = vector.broadcast %cst_40 : f32 to vector<1x8xf32>
    %79 = arith.mulf %77, %78 : vector<1x8xf32>
    %80 = arith.mulf %76, %76 : vector<1x8xf32>
    %81 = arith.subf %79, %80 : vector<1x8xf32>
    %cst_41 = arith.constant 0.000000e+00 : f32
    %82 = vector.broadcast %cst_41 : f32 to vector<1x8xf32>
    %83 = arith.maximumf %81, %82 : vector<1x8xf32>
    %cst_42 = arith.constant 9.99999974E-6 : f32
    %84 = vector.broadcast %cst_42 : f32 to vector<1x8xf32>
    %85 = arith.addf %83, %84 : vector<1x8xf32>
    %86 = math.rsqrt %85 : vector<1x8xf32>
    %87 = arith.mulf %64, %86 : vector<1x8xf32>
    %88 = arith.mulf %76, %87 : vector<1x8xf32>
    %89 = arith.subf %65, %88 : vector<1x8xf32>
    %90 = tpu.concatenate %87, %89 in 0 : vector<1x8xf32>, vector<1x8xf32> -> vector<2x8xf32>
    %c0_43 = arith.constant 0 : index
    %c0_44 = arith.constant 0 : index
    %91 = vector.load %arg10[%c0_43, %c0_44] : memref<8x128xf32, #tpu.memory_space<vmem>>, vector<8x128xf32>
    %cst_45 = arith.constant dense<0.000000e+00> : vector<2x128xf32>
    %92 = tpu.matmul %90, %91, %cst_45 {dimension_numbers = #tpu.dot_dimension_numbers<[1], [0], [0], [1], [0, 0, 1, 1], [], []>} : vector<2x8xf32>, vector<8x128xf32>, vector<2x128xf32> -> vector<2x128xf32>
    %93 = vector.extract_strided_slice %92 {offsets = [0, 0], sizes = [1, 128], strides = [1, 1]} : vector<2x128xf32> to vector<1x128xf32>
    %94 = vector.broadcast %93 : vector<1x128xf32> to vector<32x128xf32>
    %95 = arith.mulf %63, %94 : vector<32x128xf32>
    %96 = vector.extract_strided_slice %92 {offsets = [1, 0], sizes = [1, 128], strides = [1, 1]} : vector<2x128xf32> to vector<1x128xf32>
    %97 = vector.broadcast %96 : vector<1x128xf32> to vector<32x128xf32>
    %98 = arith.addf %95, %97 : vector<32x128xf32>
    %cst_46 = arith.constant 0.000000e+00 : f32
    %99 = vector.broadcast %cst_46 : f32 to vector<32x128xf32>
    %100 = arith.maximumf %98, %99 : vector<32x128xf32>
    %c0_47 = arith.constant 0 : index
    %c0_48 = arith.constant 0 : index
    %101 = vector.load %arg11[%c0_47, %c0_48] : memref<32x128xf32, #tpu.memory_space<vmem>>, vector<32x128xf32>
    tpu.vector_store %arg11[%c0_47, %c0_48], %100 {strides = array<i32>} : memref<32x128xf32, #tpu.memory_space<vmem>>, vector<32x128xf32>,
    return
  }
}

</mosaic_0001>

<llo_original>
// kernel: tile.25
$region0: #{tile.25}
  %s0 = inlined_call_operand.vmem [shape: f32[16,8,8], index: 0, kind: input, shape index: {}]
  %s1 = inlined_call_operand.vmem [shape: f32[128,8], index: 1, kind: output, shape index: {}]
  %s2 = smov 3
  %v3 = vld [vmem:[%s0] ss:$16 sm:%s2]
  %s4 = smov 12
  %v5 = vld [vmem:[%s0] ss:$16 sm:%s4]
  %vm6 = vcmask 1043458
  %v7 = vsel %vm6, %v5, %v3
  %s8 = smov 48
  %v9 = vld [vmem:[%s0] ss:$16 sm:%s8]
  %vm10 = vcmask 1045508
  %v11 = vsel %vm10, %v9, %v7
  %s12 = smov 192
  %v13 = vld [vmem:[%s0] ss:$16 sm:%s12]
  %vm14 = vcmask 1047558
  %v15 = vsel %vm14, %v13, %v11
  %vm16 = vcmask 64512
  %17 = vst.msk [vmem:[%s1] sm:$0xff] %vm16, %v15
  %s18 = scalar_lea.vmem %s0, 15
  %s19 = smov 3
  %v20 = vld [vmem:[%s18] ss:$16 sm:%s19]
  %s21 = scalar_lea.vmem %s0, 15
  %s22 = smov 12
  %v23 = vld [vmem:[%s21] ss:$16 sm:%s22]
  %vm24 = vcmask 1043458
  %v25 = vsel %vm24, %v23, %v20
  %s26 = scalar_lea.vmem %s0, 15
  %s27 = smov 48
  %v28 = vld [vmem:[%s26] ss:$16 sm:%s27]
  %vm29 = vcmask 1045508
  %v30 = vsel %vm29, %v28, %v25
  %s31 = scalar_lea.vmem %s0, 15
  %s32 = smov 192
  %v33 = vld [vmem:[%s31] ss:$16 sm:%s32]
  %vm34 = vcmask 1047558
  %v35 = vsel %vm34, %v33, %v30
  %36 = vrot.lane.b32.xlu0 %v35, 120
  %v37 = vpop.permute.xlu0 %36
  %vm38 = vcmask 1048512
  %39 = vst.msk [vmem:[%s1] sm:$0xff] %vm38, %v37
  %s40 = scalar_lea.vmem %s0, 14
  %s41 = smov 3
  %v42 = vld [vmem:[%s40] ss:$16 sm:%s41]
  %s43 = scalar_lea.vmem %s0, 14
  %s44 = smov 12
  %v45 = vld [vmem:[%s43] ss:$16 sm:%s44]
  %vm46 = vcmask 1043458
  %v47 = vsel %vm46, %v45, %v42
  %s48 = scalar_lea.vmem %s0, 14
  %s49 = smov 48
  %v50 = vld [vmem:[%s48] ss:$16 sm:%s49]
  %vm51 = vcmask 1045508
  %v52 = vsel %vm51, %v50, %v47
  %s53 = scalar_lea.vmem %s0, 14
  %s54 = smov 192
  %v55 = vld [vmem:[%s53] ss:$16 sm:%s54]
  %vm56 = vcmask 1047558
  %v57 = vsel %vm56, %v55, %v52
  %58 = vrot.lane.b32.xlu0 %v57, 112
  %v59 = vpop.permute.xlu0 %58
  %vm60 = vcmask 982912
  %61 = vst.msk [vmem:[%s1] sm:$0xff] %vm60, %v59
  %s62 = scalar_lea.vmem %s0, 13
  %s63 = smov 3
  %v64 = vld [vmem:[%s62] ss:$16 sm:%s63]
  %s65 = scalar_lea.vmem %s0, 13
  %s66 = smov 12
  %v67 = vld [vmem:[%s65] ss:$16 sm:%s66]
  %vm68 = vcmask 1043458
  %v69 = vsel %vm68, %v67, %v64
  %s70 = scalar_lea.vmem %s0, 13
  %s71 = smov 48
  %v72 = vld [vmem:[%s70] ss:$16 sm:%s71]
  %vm73 = vcmask 1045508
  %v74 = vsel %vm73, %v72, %v69
  %s75 = scalar_lea.vmem %s0, 13
  %s76 = smov 192
  %v77 = vld [vmem:[%s75] ss:$16 sm:%s76]
  %vm78 = vcmask 1047558
  %v79 = vsel %vm78, %v77, %v74
  %80 = vrot.lane.b32.xlu0 %v79, 104
  %v81 = vpop.permute.xlu0 %80
  %vm82 = vcmask 917312
  %83 = vst.msk [vmem:[%s1] sm:$0xff] %vm82, %v81
  %s84 = scalar_lea.vmem %s0, 12
  %s85 = smov 3
  %v86 = vld [vmem:[%s84] ss:$16 sm:%s85]
  %s87 = scalar_lea.vmem %s0, 12
  %s88 = smov 12
  %v89 = vld [vmem:[%s87] ss:$16 sm:%s88]
  %vm90 = vcmask 1043458
  %v91 = vsel %vm90, %v89, %v86
  %s92 = scalar_lea.vmem %s0, 12
  %s93 = smov 48
  %v94 = vld [vmem:[%s92] ss:$16 sm:%s93]
  %vm95 = vcmask 1045508
  %v96 = vsel %vm95, %v94, %v91
  %s97 = scalar_lea.vmem %s0, 12
  %s98 = smov 192
  %v99 = vld [vmem:[%s97] ss:$16 sm:%s98]
  %vm100 = vcmask 1047558
  %v101 = vsel %vm100, %v99, %v96
  %102 = vrot.lane.b32.xlu0 %v101, 96
  %v103 = vpop.permute.xlu0 %102
  %vm104 = vcmask 851712
  %105 = vst.msk [vmem:[%s1] sm:$0xff] %vm104, %v103
  %s106 = scalar_lea.vmem %s0, 11
  %s107 = smov 3
  %v108 = vld [vmem:[%s106] ss:$16 sm:%s107]
  %s109 = scalar_lea.vmem %s0, 11
  %s110 = smov 12
  %v111 = vld [vmem:[%s109] ss:$16 sm:%s110]
  %vm112 = vcmask 1043458
  %v113 = vsel %vm112, %v111, %v108
  %s114 = scalar_lea.vmem %s0, 11
  %s115 = smov 48
  %v116 = vld [vmem:[%s114] ss:$16 sm:%s115]
  %vm117 = vcmask 1045508
  %v118 = vsel %vm117, %v116, %v113
  %s119 = scalar_lea.vmem %s0, 11
  %s120 = smov 192
  %v121 = vld [vmem:[%s119] ss:$16 sm:%s120]
  %vm122 = vcmask 1047558
  %v123 = vsel %vm122, %v121, %v118
  %124 = vrot.lane.b32.xlu0 %v123, 88
  %v125 = vpop.permute.xlu0 %124
  %vm126 = vcmask 786112
  %127 = vst.msk [vmem:[%s1] sm:$0xff] %vm126, %v125
  %s128 = scalar_lea.vmem %s0, 10
  %s129 = smov 3
  %v130 = vld [vmem:[%s128] ss:$16 sm:%s129]
  %s131 = scalar_lea.vmem %s0, 10
  %s132 = smov 12
  %v133 = vld [vmem:[%s131] ss:$16 sm:%s132]
  %vm134 = vcmask 1043458
  %v135 = vsel %vm134, %v133, %v130
  %s136 = scalar_lea.vmem %s0, 10
  %s137 = smov 48
  %v138 = vld [vmem:[%s136] ss:$16 sm:%s137]
  %vm139 = vcmask 1045508
  %v140 = vsel %vm139, %v138, %v135
  %s141 = scalar_lea.vmem %s0, 10
  %s142 = smov 192
  %v143 = vld [vmem:[%s141] ss:$16 sm:%s142]
  %vm144 = vcmask 1047558
  %v145 = vsel %vm144, %v143, %v140
  %146 = vrot.lane.b32.xlu0 %v145, 80
  %v147 = vpop.permute.xlu0 %146
  %vm148 = vcmask 720512
  %149 = vst.msk [vmem:[%s1] sm:$0xff] %vm148, %v147
  %s150 = scalar_lea.vmem %s0, 9
  %s151 = smov 3
  %v152 = vld [vmem:[%s150] ss:$16 sm:%s151]
  %s153 = scalar_lea.vmem %s0, 9
  %s154 = smov 12
  %v155 = vld [vmem:[%s153] ss:$16 sm:%s154]
  %vm156 = vcmask 1043458
  %v157 = vsel %vm156, %v155, %v152
  %s158 = scalar_lea.vmem %s0, 9
  %s159 = smov 48
  %v160 = vld [vmem:[%s158] ss:$16 sm:%s159]
  %vm161 = vcmask 1045508
  %v162 = vsel %vm161, %v160, %v157
  %s163 = scalar_lea.vmem %s0, 9
  %s164 = smov 192
  %v165 = vld [vmem:[%s163] ss:$16 sm:%s164]
  %vm166 = vcmask 1047558
  %v167 = vsel %vm166, %v165, %v162
  %168 = vrot.lane.b32.xlu0 %v167, 72
  %v169 = vpop.permute.xlu0 %168
  %vm170 = vcmask 654912
  %171 = vst.msk [vmem:[%s1] sm:$0xff] %vm170, %v169
  %s172 = scalar_lea.vmem %s0, 8
  %s173 = smov 3
  %v174 = vld [vmem:[%s172] ss:$16 sm:%s173]
  %s175 = scalar_lea.vmem %s0, 8
  %s176 = smov 12
  %v177 = vld [vmem:[%s175] ss:$16 sm:%s176]
  %vm178 = vcmask 1043458
  %v179 = vsel %vm178, %v177, %v174
  %s180 = scalar_lea.vmem %s0, 8
  %s181 = smov 48
  %v182 = vld [vmem:[%s180] ss:$16 sm:%s181]
  %vm183 = vcmask 1045508
  %v184 = vsel %vm183, %v182, %v179
  %s185 = scalar_lea.vmem %s0, 8
  %s186 = smov 192
  %v187 = vld [vmem:[%s185] ss:$16 sm:%s186]
  %vm188 = vcmask 1047558
  %v189 = vsel %vm188, %v187, %v184
  %190 = vrot.lane.b32.xlu0 %v189, 64
  %v191 = vpop.permute.xlu0 %190
  %vm192 = vcmask 589312
  %193 = vst.msk [vmem:[%s1] sm:$0xff] %vm192, %v191
  %s194 = scalar_lea.vmem %s0, 7
  %s195 = smov 3
  %v196 = vld [vmem:[%s194] ss:$16 sm:%s195]
  %s197 = scalar_lea.vmem %s0, 7
  %s198 = smov 12
  %v199 = vld [vmem:[%s197] ss:$16 sm:%s198]
  %vm200 = vcmask 1043458
  %v201 = vsel %vm200, %v199, %v196
  %s202 = scalar_lea.vmem %s0, 7
  %s203 = smov 48
  %v204 = vld [vmem:[%s202] ss:$16 sm:%s203]
  %vm205 = vcmask 1045508
  %v206 = vsel %vm205, %v204, %v201
  %s207 = scalar_lea.vmem %s0, 7
  %s208 = smov 192
  %v209 = vld [vmem:[%s207] ss:$16 sm:%s208]
  %vm210 = vcmask 1047558
  %v211 = vsel %vm210, %v209, %v206
  %212 = vrot.lane.b32.xlu0 %v211, 56
  %v213 = vpop.permute.xlu0 %212
  %vm214 = vcmask 523712
  %215 = vst.msk [vmem:[%s1] sm:$0xff] %vm214, %v213
  %s216 = scalar_lea.vmem %s0, 6
  %s217 = smov 3
  %v218 = vld [vmem:[%s216] ss:$16 sm:%s217]
  %s219 = scalar_lea.vmem %s0, 6
  %s220 = smov 12
  %v221 = vld [vmem:[%s219] ss:$16 sm:%s220]
  %vm222 = vcmask 1043458
  %v223 = vsel %vm222, %v221, %v218
  %s224 = scalar_lea.vmem %s0, 6
  %s225 = smov 48
  %v226 = vld [vmem:[%s224] ss:$16 sm:%s225]
  %vm227 = vcmask 1045508
  %v228 = vsel %vm227, %v226, %v223
  %s229 = scalar_lea.vmem %s0, 6
  %s230 = smov 192
  %v231 = vld [vmem:[%s229] ss:$16 sm:%s230]
  %vm232 = vcmask 1047558
  %v233 = vsel %vm232, %v231, %v228
  %234 = vrot.lane.b32.xlu0 %v233, 48
  %v235 = vpop.permute.xlu0 %234
  %vm236 = vcmask 458112
  %237 = vst.msk [vmem:[%s1] sm:$0xff] %vm236, %v235
  %s238 = scalar_lea.vmem %s0, 5
  %s239 = smov 3
  %v240 = vld [vmem:[%s238] ss:$16 sm:%s239]
  %s241 = scalar_lea.vmem %s0, 5
  %s242 = smov 12
  %v243 = vld [vmem:[%s241] ss:$16 sm:%s242]
  %vm244 = vcmask 1043458
  %v245 = vsel %vm244, %v243, %v240
  %s246 = scalar_lea.vmem %s0, 5
  %s247 = smov 48
  %v248 = vld [vmem:[%s246] ss:$16 sm:%s247]
  %vm249 = vcmask 1045508
  %v250 = vsel %vm249, %v248, %v245
  %s251 = scalar_lea.vmem %s0, 5
  %s252 = smov 192
  %v253 = vld [vmem:[%s251] ss:$16 sm:%s252]
  %vm254 = vcmask 1047558
  %v255 = vsel %vm254, %v253, %v250
  %256 = vrot.lane.b32.xlu0 %v255, 40
  %v257 = vpop.permute.xlu0 %256
  %vm258 = vcmask 392512
  %259 = vst.msk [vmem:[%s1] sm:$0xff] %vm258, %v257
  %s260 = scalar_lea.vmem %s0, 4
  %s261 = smov 3
  %v262 = vld [vmem:[%s260] ss:$16 sm:%s261]
  %s263 = scalar_lea.vmem %s0, 4
  %s264 = smov 12
  %v265 = vld [vmem:[%s263] ss:$16 sm:%s264]
  %vm266 = vcmask 1043458
  %v267 = vsel %vm266, %v265, %v262
  %s268 = scalar_lea.vmem %s0, 4
  %s269 = smov 48
  %v270 = vld [vmem:[%s268] ss:$16 sm:%s269]
  %vm271 = vcmask 1045508
  %v272 = vsel %vm271, %v270, %v267
  %s273 = scalar_lea.vmem %s0, 4
  %s274 = smov 192
  %v275 = vld [vmem:[%s273] ss:$16 sm:%s274]
  %vm276 = vcmask 1047558
  %v277 = vsel %vm276, %v275, %v272
  %278 = vrot.lane.b32.xlu0 %v277, 32
  %v279 = vpop.permute.xlu0 %278
  %vm280 = vcmask 326912
  %281 = vst.msk [vmem:[%s1] sm:$0xff] %vm280, %v279
  %s282 = scalar_lea.vmem %s0, 3
  %s283 = smov 3
  %v284 = vld [vmem:[%s282] ss:$16 sm:%s283]
  %s285 = scalar_lea.vmem %s0, 3
  %s286 = smov 12
  %v287 = vld [vmem:[%s285] ss:$16 sm:%s286]
  %vm288 = vcmask 1043458
  %v289 = vsel %vm288, %v287, %v284
  %s290 = scalar_lea.vmem %s0, 3
  %s291 = smov 48
  %v292 = vld [vmem:[%s290] ss:$16 sm:%s291]
  %vm293 = vcmask 1045508
  %v294 = vsel %vm293, %v292, %v289
  %s295 = scalar_lea.vmem %s0, 3
  %s296 = smov 192
  %v297 = vld [vmem:[%s295] ss:$16 sm:%s296]
  %vm298 = vcmask 1047558
  %v299 = vsel %vm298, %v297, %v294
  %300 = vrot.lane.b32.xlu0 %v299, 24
  %v301 = vpop.permute.xlu0 %300
  %vm302 = vcmask 261312
  %303 = vst.msk [vmem:[%s1] sm:$0xff] %vm302, %v301
  %s304 = scalar_lea.vmem %s0, 2
  %s305 = smov 3
  %v306 = vld [vmem:[%s304] ss:$16 sm:%s305]
  %s307 = scalar_lea.vmem %s0, 2
  %s308 = smov 12
  %v309 = vld [vmem:[%s307] ss:$16 sm:%s308]
  %vm310 = vcmask 1043458
  %v311 = vsel %vm310, %v309, %v306
  %s312 = scalar_lea.vmem %s0, 2
  %s313 = smov 48
  %v314 = vld [vmem:[%s312] ss:$16 sm:%s313]
  %vm315 = vcmask 1045508
  %v316 = vsel %vm315, %v314, %v311
  %s317 = scalar_lea.vmem %s0, 2
  %s318 = smov 192
  %v319 = vld [vmem:[%s317] ss:$16 sm:%s318]
  %vm320 = vcmask 1047558
  %v321 = vsel %vm320, %v319, %v316
  %322 = vrot.lane.b32.xlu0 %v321, 16
  %v323 = vpop.permute.xlu0 %322
  %vm324 = vcmask 195712
  %325 = vst.msk [vmem:[%s1] sm:$0xff] %vm324, %v323
  %s326 = scalar_lea.vmem %s0, 1
  %s327 = smov 3
  %v328 = vld [vmem:[%s326] ss:$16 sm:%s327]
  %s329 = scalar_lea.vmem %s0, 1
  %s330 = smov 12
  %v331 = vld [vmem:[%s329] ss:$16 sm:%s330]
  %vm332 = vcmask 1043458
  %v333 = vsel %vm332, %v331, %v328
  %s334 = scalar_lea.vmem %s0, 1
  %s335 = smov 48
  %v336 = vld [vmem:[%s334] ss:$16 sm:%s335]
  %vm337 = vcmask 1045508
  %v338 = vsel %vm337, %v336, %v333
  %s339 = scalar_lea.vmem %s0, 1
  %s340 = smov 192
  %v341 = vld [vmem:[%s339] ss:$16 sm:%s340]
  %vm342 = vcmask 1047558
  %v343 = vsel %vm342, %v341, %v338
  %344 = vrot.lane.b32.xlu0 %v343, 8
  %v345 = vpop.permute.xlu0 %344
  %vm346 = vcmask 130112
  %347 = vst.msk [vmem:[%s1] sm:$0xff] %vm346, %v345

// kernel: double_conv.1
$region0: #{double_conv.1}
  #allocation0 [shape = 'u32[]', space=smem, size = 0x4, offset = 0x4, fixed_abs, tag = 'smem constant byte address 0x4 - core index']
  #allocation1 [shape = 'u32[72,128]{1,0:T(1,128)}', space=vmem, size = 0x9000, scoped, tag = 'internal scratch']
  %s0 = inlined_call_operand.vmem [shape: bf16[2,16,64], index: 0, kind: input, shape index: {}]
  %s1 = inlined_call_operand.vmem [shape: bf16[192,128], index: 1, kind: input, shape index: {}]
  %s2 = inlined_call_operand.vmem [shape: f32[1,128], index: 2, kind: input, shape index: {}]
  %s3 = inlined_call_operand.vmem [shape: f32[1,8], index: 3, kind: input, shape index: {}]
  %s4 = inlined_call_operand.vmem [shape: f32[1,8], index: 4, kind: input, shape index: {}]
  %s5 = inlined_call_operand.vmem [shape: bf16[384,128], index: 5, kind: input, shape index: {}]
  %s6 = inlined_call_operand.vmem [shape: f32[1,128], index: 6, kind: input, shape index: {}]
  %s7 = inlined_call_operand.vmem [shape: f32[1,8], index: 7, kind: input, shape index: {}]
  %s8 = inlined_call_operand.vmem [shape: f32[1,8], index: 8, kind: input, shape index: {}]
  %s9 = inlined_call_operand.vmem [shape: f32[128,8], index: 9, kind: input, shape index: {}]
  %s10 = inlined_call_operand.vmem [shape: f32[8,128], index: 10, kind: input, shape index: {}]
  %s11 = inlined_call_operand.vmem [shape: f32[32,128], index: 11, kind: output, shape index: {}]
  %s12 = sld [smem:[#allocation0]]
  $region54: #{double_conv.1} parent=0
    _
  %s14 = ssub.s32 1, %s12
  %s15 = scalar_select 0, %s14, %s12
  // Predicated region
  $region2: #{double_conv.1} parent=0 // pred_check
    _
  $region3: #{double_conv.1} parent=0 // pred_check_branch
    %17 = sbr.rel (0) target = $region5
  $region4: #{double_conv.1} parent=0 // pred_region
    _
  $region5: #{double_conv.1} parent=0 // pred_fallthru
    _
  // Predicated region
  $region6: #{double_conv.1} parent=0 // pred_check
    _
  $region7: #{double_conv.1} parent=0 // pred_check_branch
    %19 = sbr.rel (0) target = $region9
  $region8: #{double_conv.1} parent=0 // pred_region
    _
  $region9: #{double_conv.1} parent=0 // pred_fallthru
    _
  // Predicated region
  $region10: #{double_conv.1} parent=0 // pred_check
    _
  $region11: #{double_conv.1} parent=0 // pred_check_branch
    %21 = sbr.rel (0) target = $region13
  $region12: #{double_conv.1} parent=0 // pred_region
    _
  $region13: #{double_conv.1} parent=0 // pred_fallthru
    _
  // Predicated region
  $region14: #{double_conv.1} parent=0 // pred_check
    _
  $region15: #{double_conv.1} parent=0 // pred_check_branch
    %23 = sbr.rel (0) target = $region17
  $region16: #{double_conv.1} parent=0 // pred_region
    _
  $region17: #{double_conv.1} parent=0 // pred_fallthru
    _
  // Predicated region
  $region18: #{double_conv.1} parent=0 // pred_check
    _
  $region19: #{double_conv.1} parent=0 // pred_check_branch
    %25 = sbr.rel (0) target = $region21
  $region20: #{double_conv.1} parent=0 // pred_region
    _
  $region21: #{double_conv.1} parent=0 // pred_fallthru
    _
  // Predicated region
  $region22: #{double_conv.1} parent=0 // pred_check
    _
  $region23: #{double_conv.1} parent=0 // pred_check_branch
    %27 = sbr.rel (0) target = $region25
  $region24: #{double_conv.1} parent=0 // pred_region
    _
  $region25: #{double_conv.1} parent=0 // pred_fallthru
    _
  // Predicated region
  $region26: #{double_conv.1} parent=0 // pred_check
    _
  $region27: #{double_conv.1} parent=0 // pred_check_branch
    %29 = sbr.rel (0) target = $region29
  $region28: #{double_conv.1} parent=0 // pred_region
    _
  $region29: #{double_conv.1} parent=0 // pred_fallthru
    _
  // Predicated region
  $region30: #{double_conv.1} parent=0 // pred_check
    _
  $region31: #{double_conv.1} parent=0 // pred_check_branch
    %31 = sbr.rel (0) target = $region33
  $region32: #{double_conv.1} parent=0 // pred_region
    _
  $region33: #{double_conv.1} parent=0 // pred_fallthru
    _
  // Predicated region
  $region34: #{double_conv.1} parent=0 // pred_check
    _
  $region35: #{double_conv.1} parent=0 // pred_check_branch
    %33 = sbr.rel (0) target = $region37
  $region36: #{double_conv.1} parent=0 // pred_region
    _
  $region37: #{double_conv.1} parent=0 // pred_fallthru
    _
  // Predicated region
  $region38: #{double_conv.1} parent=0 // pred_check
    _
  $region39: #{double_conv.1} parent=0 // pred_check_branch
    %35 = sbr.rel (0) target = $region41
  $region40: #{double_conv.1} parent=0 // pred_region
    _
  $region41: #{double_conv.1} parent=0 // pred_fallthru
    _
  // Predicated region
  $region42: #{double_conv.1} parent=0 // pred_check
    _
  $region43: #{double_conv.1} parent=0 // pred_check_branch
    %37 = sbr.rel (0) target = $region45
  $region44: #{double_conv.1} parent=0 // pred_region
    _
  $region45: #{double_conv.1} parent=0 // pred_fallthru
    _
  %v39 = vld [vmem:[%s0] sm:$0xf]
  %v40 = vld [vmem:[%s0 + $0x4] sm:$0xf]
  %v41 = vld [vmem:[%s0 + $0x8] sm:$0xf]
  %v42 = vld [vmem:[%s0 + $0xc] sm:$0xf]
  %v43 = vld [vmem:[%s2] sm:$0x1]
  %v48 = vunpack.c.l.b16 %v39
  %v49 = vunpack.c.l.b16 %v40
  %v50 = vunpack.c.l.b16 %v41
  %v51 = vunpack.c.l.b16 %v42
  %v52 = vpack.c.b16 %v49, %v48
  %v53 = vpack.c.b16 %v51, %v50
  %v55 = vshrl.u32 %v52, 16
  %v57 = vrot.slane %v55, 7
  %v58 = vshll.u32 %v52, 16
  %v60 = vor.u32 %v57, %v58
  %v62 = vshrl.u32 %v53, 16
  %v64 = vrot.slane %v62, 7
  %v65 = vshll.u32 %v53, 16
  %v67 = vor.u32 %v64, %v65
  %vm70 = vcmask 1040384
  %vm71 = vsmask.f32 256
  %vm72 = vmand %vm70, %vm71
  %v73 = vsel %vm72, 0, %v60
  %v74 = vsel %vm72, 0, %v67
  %v75 = vrot.slane %v58, 1
  %v76 = vor.u32 %v55, %v75
  %v77 = vrot.slane %v65, 1
  %v78 = vor.u32 %v62, %v77
  %vm81 = vcmask 1047552
  %vm82 = vsmask.f32 7424
  %vm83 = vmand %vm81, %vm82
  %v84 = vsel %vm83, %v76, 0
  %v85 = vsel %vm83, %v78, 0
  %86 = vrot.lane.b32.xlu0 %v52, 64
  %v87 = vpop.permute.xlu0 %86
  %88 = vrot.lane.b32.xlu0 %v53, 64
  %v89 = vpop.permute.xlu0 %88
  %vm90 = vcmask 523264
  %v93 = vsel %vm90, %v73, %v87
  %v97 = vsel %vm90, %v74, %v89
  %v99 = vld [vmem:[%s1] sm:$0xf]
  %v100 = vld [vmem:[%s1 + $0x4] sm:$0xf]
  %v101 = vld [vmem:[%s1 + $0x8] sm:$0xf]
  %v102 = vld [vmem:[%s1 + $0xc] sm:$0xf]
  %v103 = vld [vmem:[%s1 + $0x10] sm:$0xf]
  %v104 = vld [vmem:[%s1 + $0x14] sm:$0xf]
  %v105 = vld [vmem:[%s1 + $0x18] sm:$0xf]
  %v106 = vld [vmem:[%s1 + $0x1c] sm:$0xf]
  %v107 = vld [vmem:[%s1 + $0x20] sm:$0xf]
  %v108 = vld [vmem:[%s1 + $0x24] sm:$0xf]
  %v109 = vld [vmem:[%s1 + $0x28] sm:$0xf]
  %v110 = vld [vmem:[%s1 + $0x2c] sm:$0xf]
  %v111 = vld [vmem:[%s1 + $0x30] sm:$0xf]
  %v112 = vld [vmem:[%s1 + $0x34] sm:$0xf]
  %v113 = vld [vmem:[%s1 + $0x38] sm:$0xf]
  %v114 = vld [vmem:[%s1 + $0x3c] sm:$0xf]
  %v115 = vld [vmem:[%s1 + $0x40] sm:$0xf]
  %v116 = vld [vmem:[%s1 + $0x44] sm:$0xf]
  %v117 = vld [vmem:[%s1 + $0x48] sm:$0xf]
  %v118 = vld [vmem:[%s1 + $0x4c] sm:$0xf]
  %v119 = vld [vmem:[%s1 + $0x50] sm:$0xf]
  %v120 = vld [vmem:[%s1 + $0x54] sm:$0xf]
  %v121 = vld [vmem:[%s1 + $0x58] sm:$0xf]
  %v122 = vld [vmem:[%s1 + $0x5c] sm:$0xf]
  %v124 = vperm.slane %v43, 0
  %v150 = vunpack.c.l.b16 %v99
  %v151 = vunpack.c.l.b16 %v100
  %v152 = vunpack.c.l.b16 %v101
  %v153 = vunpack.c.l.b16 %v102
  %v154 = vunpack.c.l.b16 %v103
  %v155 = vunpack.c.l.b16 %v104
  %v156 = vunpack.c.l.b16 %v105
  %v157 = vunpack.c.l.b16 %v106
  %v158 = vunpack.c.l.b16 %v107
  %v159 = vunpack.c.l.b16 %v108
  %v160 = vunpack.c.l.b16 %v109
  %v161 = vunpack.c.l.b16 %v110
  %v162 = vunpack.c.l.b16 %v111
  %v163 = vunpack.c.l.b16 %v112
  %v164 = vunpack.c.l.b16 %v113
  %v165 = vunpack.c.l.b16 %v114
  %v166 = vunpack.c.l.b16 %v115
  %v167 = vunpack.c.l.b16 %v116
  %v168 = vunpack.c.l.b16 %v117
  %v169 = vunpack.c.l.b16 %v118
  %v170 = vunpack.c.l.b16 %v119
  %v171 = vunpack.c.l.b16 %v120
  %v172 = vunpack.c.l.b16 %v121
  %v173 = vunpack.c.l.b16 %v122
  %v174 = vpack.c.b16 %v151, %v150
  %v175 = vpack.c.b16 %v153, %v152
  %v176 = vpack.c.b16 %v155, %v154
  %v177 = vpack.c.b16 %v157, %v156
  %v178 = vpack.c.b16 %v159, %v158
  %v179 = vpack.c.b16 %v161, %v160
  %v180 = vpack.c.b16 %v163, %v162
  %v181 = vpack.c.b16 %v165, %v164
  %v182 = vpack.c.b16 %v167, %v166
  %v183 = vpack.c.b16 %v169, %v168
  %v184 = vpack.c.b16 %v171, %v170
  %v185 = vpack.c.b16 %v173, %v172
  %v199 = vsel %vm90, %v84, 0
  %v202 = vsel %vm90, %v85, 0
  %204 = vmatpush.bf16.msra.mxu0 %v181
  %205 = vmatpush.bf16.msra.mxu0 %v180
  %206 = vmatpush.bf16.msra.mxu0 %v179
  %207 = vmatpush.bf16.msra.mxu0 %v178
  %208 = vmatpush.bf16.msra.mxu0 %v177
  %209 = vmatpush.bf16.msra.mxu0 %v176
  %210 = vmatpush.bf16.msra.mxu0 %v175
  %211 = vmatpush.bf16.msra.mxu0 %v174
  %212 = vmatmul.bf16.gmra.mxu0 %v93
  %v213 = vpop.f32.mrf.mxu0
  %v214 = vadd.f32 %v124, %v213
  %v215 = vpop.f32.mrf.mxu0
  %v216 = vadd.f32 %v124, %v215
  %217 = vmatmul.bf16.gmra.mxu0 %v97
  %v218 = vpop.f32.mrf.mxu0
  %v219 = vadd.f32 %v124, %v218
  %v220 = vpop.f32.mrf.mxu0
  %v221 = vadd.f32 %v124, %v220
  %222 = vdwg.mxu0
  %223 = vmatpush.bf16.msra.mxu0 0
  %224 = vmatpush.bf16.msra.mxu0 0
  %225 = vmatpush.bf16.msra.mxu0 0
  %226 = vmatpush.bf16.msra.mxu0 0
  %227 = vmatpush.bf16.msra.mxu0 %v185
  %228 = vmatpush.bf16.msra.mxu0 %v184
  %229 = vmatpush.bf16.msra.mxu0 %v183
  %230 = vmatpush.bf16.msra.mxu0 %v182
  %231 = vmatmul.bf16.gmra.mxu0 %v199
  %v232 = vpop.f32.mrf.mxu0
  %v233 = vadd.f32 %v214, %v232
  %v234 = vpop.f32.mrf.mxu0
  %v235 = vadd.f32 %v216, %v234
  %236 = vmatmul.bf16.gmra.mxu0 %v202
  %v237 = vpop.f32.mrf.mxu0
  %v238 = vadd.f32 %v219, %v237
  %v239 = vpop.f32.mrf.mxu0
  %v240 = vadd.f32 %v221, %v239
  %241 = vdwg.mxu0
  %v242 = vld [vmem:[%s3] sm:$0x1]
  %v243 = vld [vmem:[%s4] sm:$0x1]
  %v244 = vadd.f32 %v233, %v235
  %v245 = vadd.f32 %v244, %v238
  %v246 = vadd.f32 %v245, %v240
  %v247 = vrot.slane %v246, 4
  %v248 = vadd.f32 %v246, %v247
  %v249 = vrot.slane %v248, 2
  %v250 = vadd.f32 %v248, %v249
  %v251 = vrot.slane %v250, 1
  %v252 = vadd.f32 %v250, %v251
  %v253 = vmul.f32 %v233, %v233
  %v254 = vmul.f32 %v235, %v235
  %v255 = vmul.f32 %v238, %v238
  %v256 = vmul.f32 %v240, %v240
  %v257 = vadd.f32 %v253, %v254
  %v258 = vadd.f32 %v257, %v255
  %v259 = vadd.f32 %v258, %v256
  %v260 = vrot.slane %v259, 4
  %v261 = vadd.f32 %v259, %v260
  %v262 = vrot.slane %v261, 2
  %v263 = vadd.f32 %v261, %v262
  %v264 = vrot.slane %v263, 1
  %v265 = vadd.f32 %v263, %v264
  %vm266 = vcmask 1040384
  %v267 = vsel %vm266, %v252, %v265
  %v268 = vld [vmem:[%s9] sm:$0xff]
  %v269 = vld [vmem:[%s9 + $0x8] sm:$0xff]
  %v270 = vld [vmem:[%s9 + $0x10] sm:$0xff]
  %v271 = vld [vmem:[%s9 + $0x18] sm:$0xff]
  %v272 = vld [vmem:[%s9 + $0x20] sm:$0xff]
  %v273 = vld [vmem:[%s9 + $0x28] sm:$0xff]
  %v274 = vld [vmem:[%s9 + $0x30] sm:$0xff]
  %v275 = vld [vmem:[%s9 + $0x38] sm:$0xff]
  %v276 = vld [vmem:[%s9 + $0x40] sm:$0xff]
  %v277 = vld [vmem:[%s9 + $0x48] sm:$0xff]
  %v278 = vld [vmem:[%s9 + $0x50] sm:$0xff]
  %v279 = vld [vmem:[%s9 + $0x58] sm:$0xff]
  %v280 = vld [vmem:[%s9 + $0x60] sm:$0xff]
  %v281 = vld [vmem:[%s9 + $0x68] sm:$0xff]
  %v282 = vld [vmem:[%s9 + $0x70] sm:$0xff]
  %v283 = vld [vmem:[%s9 + $0x78] sm:$0xff]
  %284 = vmatpush.msra.mxu0 %v283
  %285 = vmatpush.msra.mxu0 %v282
  %286 = vmatpush.msra.mxu0 %v281
  %287 = vmatpush.msra.mxu0 %v280
  %288 = vmatpush.msra.mxu0 %v279
  %289 = vmatpush.msra.mxu0 %v278
  %290 = vmatpush.msra.mxu0 %v277
  %291 = vmatpush.msra.mxu0 %v276
  %292 = vmatpush.msra.mxu0 %v275
  %293 = vmatpush.msra.mxu0 %v274
  %294 = vmatpush.msra.mxu0 %v273
  %295 = vmatpush.msra.mxu0 %v272
  %296 = vmatpush.msra.mxu0 %v271
  %297 = vmatpush.msra.mxu0 %v270
  %298 = vmatpush.msra.mxu0 %v269
  %299 = vmatpush.msra.mxu0 %v268
  %300 = vmatmul.f32.gmra.mxu0 %v267
  %v301 = vpop.f32.mrf.mxu0
  %v302 = vadd.f32 0.0, %v301
  %303 = vdwg.mxu0
  %v304 = vmul.f32 %v302, 0.001953125
  %v305 = vmul.f32 %v304, %v304
  %v307 = vrot.slane %v305, 7
  %v309 = vsub.f32 %v304, %v307
  %v310 = vmax.f32 %v309, 0.0
  %v311 = vadd.f32 %v310, 1e-05
  %v312 = vrsqrt.pop %v311
  %v313 = vmul.f32 %v312, %v311
  %v314 = vmul.f32 %v313, %v312
  %v315 = vmul.f32 0.5, %v314
  %v316 = vsub.f32 1.5, %v315
  %v317 = vmul.f32 %v312, %v316
  %vm318 = vweird.f32 %v311
  %vm319 = vweird.f32 %v312
  %vm320 = vmor %vm318, %vm319
  %v321 = vsel %vm320, %v312, %v317
  %323 = vst [vmem:[#allocation1] sm:$0xff] %v321
  %s324 = scalar_lea.vmem [#allocation1], 1
  %v325 = vld [vmem:[%s324] ss:$9 sm:$0xff]
  %v327 = vmul.f32 %v242, %v325
  %v328 = vmul.f32 %v304, %v327
  %v329 = vsub.f32 %v243, %v328
  %v331 = vperm.slane %v329, 0
  %v333 = vsel %vm266, %v327, %v331
  %v334 = vld [vmem:[%s10] sm:$0xff]
  %vm335 = vcmask 64512
  %v337 = vsel %vm335, %v333, 0
  %339 = vmatpush.msra.mxu0 0.0
  %340 = vmatpush.msra.mxu0 0.0
  %341 = vmatpush.msra.mxu0 0.0
  %342 = vmatpush.msra.mxu0 0.0
  %343 = vmatpush.msra.mxu0 0.0
  %344 = vmatpush.msra.mxu0 0.0
  %345 = vmatpush.msra.mxu0 0.0
  %346 = vmatpush.msra.mxu0 0.0
  %347 = vmatpush.msra.mxu0 0.0
  %348 = vmatpush.msra.mxu0 0.0
  %349 = vmatpush.msra.mxu0 0.0
  %350 = vmatpush.msra.mxu0 0.0
  %351 = vmatpush.msra.mxu0 0.0
  %352 = vmatpush.msra.mxu0 0.0
  %353 = vmatpush.msra.mxu0 0.0
  %354 = vmatpush.msra.mxu0 %v334
  %355 = vmatmul.f32.gmra.mxu0 %v337
  %v356 = vpop.f32.mrf.mxu0
  %v357 = vadd.f32 0.0, %v356
  %358 = vdwg.mxu0
  %v359 = vperm.slane %v357, 0
  %v360 = vmul.f32 %v233, %v359
  %v361 = vmul.f32 %v235, %v359
  %v362 = vmul.f32 %v238, %v359
  %v363 = vmul.f32 %v240, %v359
  %v364 = vperm.slane %v357, 1
  %v365 = vadd.f32 %v360, %v364
  %v366 = vadd.f32 %v361, %v364
  %v367 = vadd.f32 %v362, %v364
  %v368 = vadd.f32 %v363, %v364
  %v369 = vmax.f32 %v365, 0.0
  %v370 = vmax.f32 %v366, 0.0
  %v371 = vmax.f32 %v367, 0.0
  %v372 = vmax.f32 %v368, 0.0
  %v373 = vpack.c.bf16 %v369, %v369
  %v374 = vpack.c.bf16 %v370, %v370
  %v375 = vpack.c.bf16 %v371, %v371
  %v376 = vpack.c.bf16 %v372, %v372
  %v377 = vld [vmem:[%s6] sm:$0x1]
  %v382 = vunpack.c.l.b16 %v373
  %v383 = vunpack.c.l.b16 %v374
  %v384 = vunpack.c.l.b16 %v375
  %v385 = vunpack.c.l.b16 %v376
  %v386 = vpack.c.b16 %v383, %v382
  %v387 = vpack.c.b16 %v385, %v384
  %v389 = vshrl.u32 %v386, 16
  %v391 = vrot.slane %v389, 7
  %v392 = vshll.u32 %v386, 16
  %v394 = vor.u32 %v391, %v392
  %v396 = vshrl.u32 %v387, 16
  %v398 = vrot.slane %v396, 7
  %v399 = vshll.u32 %v387, 16
  %v401 = vor.u32 %v398, %v399
  %v404 = vsel %vm72, 0, %v394
  %v405 = vsel %vm72, 0, %v401
  %v406 = vrot.slane %v392, 1
  %v407 = vor.u32 %v389, %v406
  %v408 = vrot.slane %v399, 1
  %v409 = vor.u32 %v396, %v408
  %v412 = vsel %vm83, %v407, 0
  %v413 = vsel %vm83, %v409, 0
  %v416 = vld [vmem:[%s5] sm:$0xf]
  %v417 = vld [vmem:[%s5 + $0x4] sm:$0xf]
  %v418 = vld [vmem:[%s5 + $0x8] sm:$0xf]
  %v419 = vld [vmem:[%s5 + $0xc] sm:$0xf]
  %v420 = vld [vmem:[%s5 + $0x10] sm:$0xf]
  %v421 = vld [vmem:[%s5 + $0x14] sm:$0xf]
  %v422 = vld [vmem:[%s5 + $0x18] sm:$0xf]
  %v423 = vld [vmem:[%s5 + $0x1c] sm:$0xf]
  %v424 = vld [vmem:[%s5 + $0x20] sm:$0xf]
  %v425 = vld [vmem:[%s5 + $0x24] sm:$0xf]
  %v426 = vld [vmem:[%s5 + $0x28] sm:$0xf]
  %v427 = vld [vmem:[%s5 + $0x2c] sm:$0xf]
  %v428 = vld [vmem:[%s5 + $0x30] sm:$0xf]
  %v429 = vld [vmem:[%s5 + $0x34] sm:$0xf]
  %v430 = vld [vmem:[%s5 + $0x38] sm:$0xf]
  %v431 = vld [vmem:[%s5 + $0x3c] sm:$0xf]
  %v432 = vld [vmem:[%s5 + $0x40] sm:$0xf]
  %v433 = vld [vmem:[%s5 + $0x44] sm:$0xf]
  %v434 = vld [vmem:[%s5 + $0x48] sm:$0xf]
  %v435 = vld [vmem:[%s5 + $0x4c] sm:$0xf]
  %v436 = vld [vmem:[%s5 + $0x50] sm:$0xf]
  %v437 = vld [vmem:[%s5 + $0x54] sm:$0xf]
  %v438 = vld [vmem:[%s5 + $0x58] sm:$0xf]
  %v439 = vld [vmem:[%s5 + $0x5c] sm:$0xf]
  %v440 = vld [vmem:[%s5 + $0x60] sm:$0xf]
  %v441 = vld [vmem:[%s5 + $0x64] sm:$0xf]
  %v442 = vld [vmem:[%s5 + $0x68] sm:$0xf]
  %v443 = vld [vmem:[%s5 + $0x6c] sm:$0xf]
  %v444 = vld [vmem:[%s5 + $0x70] sm:$0xf]
  %v445 = vld [vmem:[%s5 + $0x74] sm:$0xf]
  %v446 = vld [vmem:[%s5 + $0x78] sm:$0xf]
  %v447 = vld [vmem:[%s5 + $0x7c] sm:$0xf]
  %v448 = vld [vmem:[%s5 + $0x80] sm:$0xf]
  %v449 = vld [vmem:[%s5 + $0x84] sm:$0xf]
  %v450 = vld [vmem:[%s5 + $0x88] sm:$0xf]
  %v451 = vld [vmem:[%s5 + $0x8c] sm:$0xf]
  %v452 = vld [vmem:[%s5 + $0x90] sm:$0xf]
  %v453 = vld [vmem:[%s5 + $0x94] sm:$0xf]
  %v454 = vld [vmem:[%s5 + $0x98] sm:$0xf]
  %v455 = vld [vmem:[%s5 + $0x9c] sm:$0xf]
  %v456 = vld [vmem:[%s5 + $0xa0] sm:$0xf]
  %v457 = vld [vmem:[%s5 + $0xa4] sm:$0xf]
  %v458 = vld [vmem:[%s5 + $0xa8] sm:$0xf]
  %v459 = vld [vmem:[%s5 + $0xac] sm:$0xf]
  %v460 = vld [vmem:[%s5 + $0xb0] sm:$0xf]
  %v461 = vld [vmem:[%s5 + $0xb4] sm:$0xf]
  %v462 = vld [vmem:[%s5 + $0xb8] sm:$0xf]
  %v463 = vld [vmem:[%s5 + $0xbc] sm:$0xf]
  %v465 = vperm.slane %v377, 0
  %v515 = vunpack.c.l.b16 %v416
  %v516 = vunpack.c.l.b16 %v417
  %v517 = vunpack.c.l.b16 %v418
  %v518 = vunpack.c.l.b16 %v419
  %v519 = vunpack.c.l.b16 %v420
  %v520 = vunpack.c.l.b16 %v421
  %v521 = vunpack.c.l.b16 %v422
  %v522 = vunpack.c.l.b16 %v423
  %v523 = vunpack.c.l.b16 %v424
  %v524 = vunpack.c.l.b16 %v425
  %v525 = vunpack.c.l.b16 %v426
  %v526 = vunpack.c.l.b16 %v427
  %v527 = vunpack.c.l.b16 %v428
  %v528 = vunpack.c.l.b16 %v429
  %v529 = vunpack.c.l.b16 %v430
  %v530 = vunpack.c.l.b16 %v431
  %v531 = vunpack.c.l.b16 %v432
  %v532 = vunpack.c.l.b16 %v433
  %v533 = vunpack.c.l.b16 %v434
  %v534 = vunpack.c.l.b16 %v435
  %v535 = vunpack.c.l.b16 %v436
  %v536 = vunpack.c.l.b16 %v437
  %v537 = vunpack.c.l.b16 %v438
  %v538 = vunpack.c.l.b16 %v439
  %v539 = vunpack.c.l.b16 %v440
  %v540 = vunpack.c.l.b16 %v441
  %v541 = vunpack.c.l.b16 %v442
  %v542 = vunpack.c.l.b16 %v443
  %v543 = vunpack.c.l.b16 %v444
  %v544 = vunpack.c.l.b16 %v445
  %v545 = vunpack.c.l.b16 %v446
  %v546 = vunpack.c.l.b16 %v447
  %v547 = vunpack.c.l.b16 %v448
  %v548 = vunpack.c.l.b16 %v449
  %v549 = vunpack.c.l.b16 %v450
  %v550 = vunpack.c.l.b16 %v451
  %v551 = vunpack.c.l.b16 %v452
  %v552 = vunpack.c.l.b16 %v453
  %v553 = vunpack.c.l.b16 %v454
  %v554 = vunpack.c.l.b16 %v455
  %v555 = vunpack.c.l.b16 %v456
  %v556 = vunpack.c.l.b16 %v457
  %v557 = vunpack.c.l.b16 %v458
  %v558 = vunpack.c.l.b16 %v459
  %v559 = vunpack.c.l.b16 %v460
  %v560 = vunpack.c.l.b16 %v461
  %v561 = vunpack.c.l.b16 %v462
  %v562 = vunpack.c.l.b16 %v463
  %v563 = vpack.c.b16 %v516, %v515
  %v564 = vpack.c.b16 %v518, %v517
  %v565 = vpack.c.b16 %v520, %v519
  %v566 = vpack.c.b16 %v522, %v521
  %v567 = vpack.c.b16 %v524, %v523
  %v568 = vpack.c.b16 %v526, %v525
  %v569 = vpack.c.b16 %v528, %v527
  %v570 = vpack.c.b16 %v530, %v529
  %v571 = vpack.c.b16 %v532, %v531
  %v572 = vpack.c.b16 %v534, %v533
  %v573 = vpack.c.b16 %v536, %v535
  %v574 = vpack.c.b16 %v538, %v537
  %v575 = vpack.c.b16 %v540, %v539
  %v576 = vpack.c.b16 %v542, %v541
  %v577 = vpack.c.b16 %v544, %v543
  %v578 = vpack.c.b16 %v546, %v545
  %v579 = vpack.c.b16 %v548, %v547
  %v580 = vpack.c.b16 %v550, %v549
  %v581 = vpack.c.b16 %v552, %v551
  %v582 = vpack.c.b16 %v554, %v553
  %v583 = vpack.c.b16 %v556, %v555
  %v584 = vpack.c.b16 %v558, %v557
  %v585 = vpack.c.b16 %v560, %v559
  %v586 = vpack.c.b16 %v562, %v561
  %611 = vmatpush.bf16.msra.mxu0 %v570
  %612 = vmatpush.bf16.msra.mxu0 %v569
  %613 = vmatpush.bf16.msra.mxu0 %v568
  %614 = vmatpush.bf16.msra.mxu0 %v567
  %615 = vmatpush.bf16.msra.mxu0 %v566
  %616 = vmatpush.bf16.msra.mxu0 %v565
  %617 = vmatpush.bf16.msra.mxu0 %v564
  %618 = vmatpush.bf16.msra.mxu0 %v563
  %619 = vmatmul.bf16.gmra.mxu0 %v404
  %v620 = vpop.f32.mrf.mxu0
  %v621 = vadd.f32 %v465, %v620
  %v622 = vpop.f32.mrf.mxu0
  %v623 = vadd.f32 %v465, %v622
  %624 = vmatmul.bf16.gmra.mxu0 %v405
  %v625 = vpop.f32.mrf.mxu0
  %v626 = vadd.f32 %v465, %v625
  %v627 = vpop.f32.mrf.mxu0
  %v628 = vadd.f32 %v465, %v627
  %629 = vdwg.mxu0
  %630 = vmatpush.bf16.msra.mxu0 %v578
  %631 = vmatpush.bf16.msra.mxu0 %v577
  %632 = vmatpush.bf16.msra.mxu0 %v576
  %633 = vmatpush.bf16.msra.mxu0 %v575
  %634 = vmatpush.bf16.msra.mxu0 %v574
  %635 = vmatpush.bf16.msra.mxu0 %v573
  %636 = vmatpush.bf16.msra.mxu0 %v572
  %637 = vmatpush.bf16.msra.mxu0 %v571
  %638 = vmatmul.bf16.gmra.mxu0 %v386
  %v639 = vpop.f32.mrf.mxu0
  %v640 = vadd.f32 %v621, %v639
  %v641 = vpop.f32.mrf.mxu0
  %v642 = vadd.f32 %v623, %v641
  %643 = vmatmul.bf16.gmra.mxu0 %v387
  %v644 = vpop.f32.mrf.mxu0
  %v645 = vadd.f32 %v626, %v644
  %v646 = vpop.f32.mrf.mxu0
  %v647 = vadd.f32 %v628, %v646
  %648 = vdwg.mxu0
  %649 = vmatpush.bf16.msra.mxu0 %v586
  %650 = vmatpush.bf16.msra.mxu0 %v585
  %651 = vmatpush.bf16.msra.mxu0 %v584
  %652 = vmatpush.bf16.msra.mxu0 %v583
  %653 = vmatpush.bf16.msra.mxu0 %v582
  %654 = vmatpush.bf16.msra.mxu0 %v581
  %655 = vmatpush.bf16.msra.mxu0 %v580
  %656 = vmatpush.bf16.msra.mxu0 %v579
  %657 = vmatmul.bf16.gmra.mxu0 %v412
  %v658 = vpop.f32.mrf.mxu0
  %v659 = vadd.f32 %v640, %v658
  %v660 = vpop.f32.mrf.mxu0
  %v661 = vadd.f32 %v642, %v660
  %662 = vmatmul.bf16.gmra.mxu0 %v413
  %v663 = vpop.f32.mrf.mxu0
  %v664 = vadd.f32 %v645, %v663
  %v665 = vpop.f32.mrf.mxu0
  %v666 = vadd.f32 %v647, %v665
  %667 = vdwg.mxu0
  %v668 = vld [vmem:[%s7] sm:$0x1]
  %v669 = vld [vmem:[%s8] sm:$0x1]
  %v670 = vadd.f32 %v659, %v661
  %v671 = vadd.f32 %v670, %v664
  %v672 = vadd.f32 %v671, %v666
  %v673 = vrot.slane %v672, 4
  %v674 = vadd.f32 %v672, %v673
  %v675 = vrot.slane %v674, 2
  %v676 = vadd.f32 %v674, %v675
  %v677 = vrot.slane %v676, 1
  %v678 = vadd.f32 %v676, %v677
  %v679 = vmul.f32 %v659, %v659
  %v680 = vmul.f32 %v661, %v661
  %v681 = vmul.f32 %v664, %v664
  %v682 = vmul.f32 %v666, %v666
  %v683 = vadd.f32 %v679, %v680
  %v684 = vadd.f32 %v683, %v681
  %v685 = vadd.f32 %v684, %v682
  %v686 = vrot.slane %v685, 4
  %v687 = vadd.f32 %v685, %v686
  %v688 = vrot.slane %v687, 2
  %v689 = vadd.f32 %v687, %v688
  %v690 = vrot.slane %v689, 1
  %v691 = vadd.f32 %v689, %v690
  %v692 = vsel %vm266, %v678, %v691
  %693 = vmatpush.msra.mxu0 %v283
  %694 = vmatpush.msra.mxu0 %v282
  %695 = vmatpush.msra.mxu0 %v281
  %696 = vmatpush.msra.mxu0 %v280
  %697 = vmatpush.msra.mxu0 %v279
  %698 = vmatpush.msra.mxu0 %v278
  %699 = vmatpush.msra.mxu0 %v277
  %700 = vmatpush.msra.mxu0 %v276
  %701 = vmatpush.msra.mxu0 %v275
  %702 = vmatpush.msra.mxu0 %v274
  %703 = vmatpush.msra.mxu0 %v273
  %704 = vmatpush.msra.mxu0 %v272
  %705 = vmatpush.msra.mxu0 %v271
  %706 = vmatpush.msra.mxu0 %v270
  %707 = vmatpush.msra.mxu0 %v269
  %708 = vmatpush.msra.mxu0 %v268
  %709 = vmatmul.f32.gmra.mxu0 %v692
  %v710 = vpop.f32.mrf.mxu0
  %v711 = vadd.f32 0.0, %v710
  %712 = vdwg.mxu0
  %v713 = vmul.f32 %v711, 0.001953125
  %v714 = vmul.f32 %v713, %v713
  %v716 = vrot.slane %v714, 7
  %v718 = vsub.f32 %v713, %v716
  %v719 = vmax.f32 %v718, 0.0
  %v720 = vadd.f32 %v719, 1e-05
  %v721 = vrsqrt.pop %v720
  %v722 = vmul.f32 %v721, %v720
  %v723 = vmul.f32 %v722, %v721
  %v724 = vmul.f32 0.5, %v723
  %v725 = vsub.f32 1.5, %v724
  %v726 = vmul.f32 %v721, %v725
  %vm727 = vweird.f32 %v720
  %vm728 = vweird.f32 %v721
  %vm729 = vmor %vm727, %vm728
  %v730 = vsel %vm729, %v721, %v726
  %732 = vst [vmem:[#allocation1] sm:$0xff] %v730
  %s733 = scalar_lea.vmem [#allocation1], 1
  %v734 = vld [vmem:[%s733] ss:$9 sm:$0xff]
  %v736 = vmul.f32 %v668, %v734
  %v737 = vmul.f32 %v713, %v736
  %v738 = vsub.f32 %v669, %v737
  %v740 = vperm.slane %v738, 0
  %v742 = vsel %vm266, %v736, %v740
  %v744 = vsel %vm335, %v742, 0
  %746 = vmatpush.msra.mxu0 0.0
  %747 = vmatpush.msra.mxu0 0.0
  %748 = vmatpush.msra.mxu0 0.0
  %749 = vmatpush.msra.mxu0 0.0
  %750 = vmatpush.msra.mxu0 0.0
  %751 = vmatpush.msra.mxu0 0.0
  %752 = vmatpush.msra.mxu0 0.0
  %753 = vmatpush.msra.mxu0 0.0
  %754 = vmatpush.msra.mxu0 0.0
  %755 = vmatpush.msra.mxu0 0.0
  %756 = vmatpush.msra.mxu0 0.0
  %757 = vmatpush.msra.mxu0 0.0
  %758 = vmatpush.msra.mxu0 0.0
  %759 = vmatpush.msra.mxu0 0.0
  %760 = vmatpush.msra.mxu0 0.0
  %761 = vmatpush.msra.mxu0 %v334
  %762 = vmatmul.f32.gmra.mxu0 %v744
  %v763 = vpop.f32.mrf.mxu0
  %v764 = vadd.f32 0.0, %v763
  %765 = vdwg.mxu0
  %v766 = vperm.slane %v764, 0
  %v767 = vmul.f32 %v659, %v766
  %v768 = vmul.f32 %v661, %v766
  %v769 = vmul.f32 %v664, %v766
  %v770 = vmul.f32 %v666, %v766
  %v771 = vperm.slane %v764, 1
  %v772 = vadd.f32 %v767, %v771
  %v773 = vadd.f32 %v768, %v771
  %v774 = vadd.f32 %v769, %v771
  %v775 = vadd.f32 %v770, %v771
  %v776 = vmax.f32 %v772, 0.0
  %v777 = vmax.f32 %v773, 0.0
  %v778 = vmax.f32 %v774, 0.0
  %v779 = vmax.f32 %v775, 0.0
  %780 = vst [vmem:[%s11] sm:$0xff] %v776
  %781 = vst [vmem:[%s11 + $0x8] sm:$0xff] %v777
  %782 = vst [vmem:[%s11 + $0x10] sm:$0xff] %v778
  %783 = vst [vmem:[%s11 + $0x18] sm:$0xff] %v779
  // Predicated region
  $region46: #{double_conv.1} parent=0 // pred_check
    _
  $region47: #{double_conv.1} parent=0 // pred_check_branch
    %785 = sbr.rel (0) target = $region49
  $region48: #{double_conv.1} parent=0 // pred_region
    _
  $region49: #{double_conv.1} parent=0 // pred_fallthru
    _
  // Predicated region
  $region50: #{double_conv.1} parent=0 // pred_check
    _
  $region51: #{double_conv.1} parent=0 // pred_check_branch
    %787 = sbr.rel (0) target = $region53
  $region52: #{double_conv.1} parent=0 // pred_region
    _
  $region53: #{double_conv.1} parent=0 // pred_fallthru
    _

</llo_original>
